<compile_context>
chip_gen: v7x
topology: tpu7x:2x2x1
jax: 0.10.0
libtpu: 0.0.40
codegen_flags: <defaults>
</compile_context>

<pallas_src>
import functools
import itertools

import jax
import jax.numpy as jnp
from jax.experimental import pallas as pl
from jax.experimental.pallas import tpu as pltpu


SUBLANE = 8                      # f32 sublane granularity for the batch tile
_VMEM_TILE_BUDGET = 20 << 20     # per-step tile footprint budget (v5e-friendly)
_VMEM_LIMIT_CAP = 60 << 20       # stay under v7x's 64 MiB physical VMEM


def _round_up(x, m):
    return (x + m - 1) // m * m


# ----------------------------- Pallas kernel --------------------------------
def _adj_decoder_kernel(x_ref, wd_ref, bd_ref, wlr_ref, blr_ref, l_ref, r_ref):
    # x:   (TB, F)     input dtype (f32 from HBM, cast in-register)
    # wd:  (F, H)      compute dtype
    # bd:  (1, H)      f32
    # wlr: (H, 2F)     compute dtype   ([Wl | Wr] fused heads)
    # blr: (1, 2F)     f32             ([bl | br])
    # l,r: (TB, F)     out dtype
    x = x_ref[...].astype(wd_ref.dtype)          # cast in-register, not in HBM

    # h = tanh(x @ Wd + bd): MXU matmul, f32 accumulate / bias / tanh
    h = jnp.tanh(
        jnp.dot(x, wd_ref[...], preferred_element_type=jnp.float32)
        + bd_ref[...])

    # [l | r] = tanh(h @ [Wl | Wr] + [bl | br]): single fused second matmul
    y = jnp.tanh(
        jnp.dot(h.astype(wlr_ref.dtype), wlr_ref[...],
                preferred_element_type=jnp.float32)
        + blr_ref[...])

    F = l_ref.shape[-1]
    l_ref[...] = y[:, :F].astype(l_ref.dtype)
    r_ref[...] = y[:, F:].astype(r_ref.dtype)


# ------------------------------ wrapper --------------------------------------
@functools.partial(jax.jit,
                   static_argnames=("block_b", "compute_dtype", "out_dtype"))
def adj_decoder_pallas(parent, wd, bd, wlr, blr, *, block_b=512,
                       compute_dtype=jnp.bfloat16, out_dtype=None):
    """parent: (B, F).  wd: (F, H), bd: (1, H) f32, wlr: (H, 2F), blr: (1, 2F) f32.

    Returns (l, r), each (B, F) in out_dtype (defaults to compute_dtype)."""
    B, F = parent.shape
    H = wd.shape[1]
    assert wd.shape == (F, H) and wlr.shape == (H, 2 * F)
    out_dtype = jnp.dtype(compute_dtype if out_dtype is None else out_dtype)

    xb = jnp.dtype(parent.dtype).itemsize
    cb = jnp.dtype(compute_dtype).itemsize
    ob = out_dtype.itemsize

    # --- batch tile selection -------------------------------------------------
    TB = max(SUBLANE, min(_round_up(block_b, SUBLANE), _round_up(B, SUBLANE)))
    if B > SUBLANE:
        # >= 2 grid steps whenever the batch allows it (keeps both v7x TCs busy)
        TB = min(TB, max(SUBLANE, _round_up(pl.cdiv(B, 2), SUBLANE)))

    def tile_bytes(tb):
        return (2 * tb * F * xb              # x, double-buffered
                + 2 * 2 * tb * F * ob        # l and r, double-buffered
                + 3 * F * H * cb             # Wd + [Wl|Wr], single-buffered
                + (H + 2 * F) * 4)           # biases (f32)

    while TB > SUBLANE and tile_bytes(TB) > _VMEM_TILE_BUDGET:
        TB = max(SUBLANE, _round_up(TB // 2, SUBLANE))

    grid = (pl.cdiv(B, TB),)
    vmem_limit = int(min(_VMEM_LIMIT_CAP,
                         max(16 << 20, 2 * tile_bytes(TB) + (2 << 20))))

    def weight_spec(shape):
        # constant block index -> VMEM-resident; single buffer saves VMEM
        return pl.BlockSpec(shape, lambda i: (0, 0),
                            pipeline_mode=pl.Buffered(1))

    l, r = pl.pallas_call(
        _adj_decoder_kernel,
        out_shape=(jax.ShapeDtypeStruct((B, F), out_dtype),
                   jax.ShapeDtypeStruct((B, F), out_dtype)),
        grid=grid,
        in_specs=[
            pl.BlockSpec((TB, F), lambda i: (i, 0)),   # x: streams over batch
            weight_spec((F, H)),                       # Wd
            weight_spec((1, H)),                       # bd
            weight_spec((H, 2 * F)),                   # [Wl | Wr]
            weight_spec((1, 2 * F)),                   # [bl | br]
        ],
        out_specs=(pl.BlockSpec((TB, F), lambda i: (i, 0)),
                   pl.BlockSpec((TB, F), lambda i: (i, 0))),
        compiler_params=pltpu.CompilerParams(
            dimension_semantics=("parallel",),         # megacore on v7x
            vmem_limit_bytes=vmem_limit),
        cost_estimate=pl.CostEstimate(
            flops=2 * B * 3 * F * H,
            transcendentals=B * (H + 2 * F),
            bytes_accessed=(B * F * xb + 3 * F * H * cb
                            + (H + 2 * F) * 4 + 2 * B * F * ob)),
    )(parent, wd, bd, wlr, blr)
    return l, r


def fuse_params(params, compute_dtype):
    """One-time fusion/cast of the per-head weights: [Wl | Wr], [bl | br]."""
    f32 = jnp.float32
    wd = params["wd"].astype(compute_dtype)
    bd = params["bd"].astype(f32)
    wlr = jnp.concatenate([params["wl"], params["wr"]], axis=1).astype(compute_dtype)
    blr = jnp.concatenate([params["bl"], params["br"]], axis=1).astype(f32)
    return wd, bd, wlr, blr


# ------------------------------ glue (bundle/unbundle) ----------------------
def bundle(inputs):
    if inputs is None:
        return None
    inputs = tuple(inputs)
    if not inputs:
        return None
    return jnp.concatenate(inputs, axis=0)


def unbundle(x):
    if x is None:
        return itertools.repeat(None)
    return list(jnp.split(x, x.shape[0], axis=0))


class AdjDecoderPallas:
    """JAX/Pallas counterpart of the PyTorch AdjDecoder module.

    Weights are fused ([Wl|Wr]) and cast to the MXU compute dtype once here, so
    the per-call hot path touches nothing but the kernel itself.  Outputs are
    emitted in the compute dtype (bf16 by default) — tanh outputs are in
    [-1, 1], so this is numerically benign for downstream tree levels."""

    def __init__(self, featureSize, hiddenSize, key,
                 compute_dtype=jnp.bfloat16, block_b=512):
        k = jax.random.split(key, 6)
        f32 = jnp.float32
        # nn.Linear-equivalent params, stored transposed as (in, out)
        self.params = {
            "wd": jax.random.normal(k[0], (featureSize, hiddenSize), f32) * 0.1,
            "bd": jax.random.normal(k[1], (1, hiddenSize), f32) * 0.1,
            "wl": jax.random.normal(k[2], (hiddenSize, featureSize), f32) * 0.1,
            "bl": jax.random.normal(k[3], (1, featureSize), f32) * 0.1,
            "wr": jax.random.normal(k[4], (hiddenSize, featureSize), f32) * 0.1,
            "br": jax.random.normal(k[5], (1, featureSize), f32) * 0.1,
        }
        self._compute_dtype = compute_dtype
        self._block_b = block_b
        self._wd, self._bd, self._wlr, self._blr = fuse_params(
            self.params, compute_dtype)

    def forward_bundled(self, parent):
        """Preferred path for tree decode: keep (B, featureSize) bundles flowing
        between levels (bucket nodes by depth in the caller)."""
        return adj_decoder_pallas(parent, self._wd, self._bd, self._wlr,
                                  self._blr, block_b=self._block_b,
                                  compute_dtype=self._compute_dtype)

    def __call__(self, parent_in):
        # PyTorch-compatible interface: list of (1, F) -> lists of (1, F).
        parent = bundle(parent_in)
        if parent is None:
            return unbundle(None), unbundle(None)
        l, r = self.forward_bundled(parent)
        return unbundle(l), unbundle(r)


# ----------------------------- reference (plain JAX) -------------------------
def _reference(parent, p):
    h = jnp.tanh(parent @ p["wd"] + p["bd"])
    l = jnp.tanh(h @ p["wl"] + p["bl"])
    r = jnp.tanh(h @ p["wr"] + p["br"])
    return l, r


if __name__ == "__main__":
    featureSize, hiddenSize = 32, 32
    batch = 2

    key = jax.random.PRNGKey(0)
    k_model, k_data, k_big = jax.random.split(key, 3)

    model = AdjDecoderPallas(featureSize, hiddenSize, k_model)

    # parent_in: list of (1, featureSize) tensors, as the PyTorch module expects
    parents = jax.random.normal(k_data, (batch, featureSize), jnp.float32)
    parent_in = [parents[i:i + 1] for i in range(batch)]

    # default path (bf16 MXU operands + bf16 outputs, f32 accumulate/bias/tanh)
    l_list, r_list = model(parent_in)
    l = jnp.concatenate(l_list, axis=0).astype(jnp.float32)
    r = jnp.concatenate(r_list, axis=0).astype(jnp.float32)
    jax.block_until_ready((l, r))

    l_ref, r_ref = _reference(parents, model.params)
    assert l.shape == (batch, featureSize) and r.shape == (batch, featureSize)
    assert jnp.allclose(l, l_ref, atol=3e-2, rtol=3e-2)
    assert jnp.allclose(r, r_ref, atol=3e-2, rtol=3e-2)

    # full-precision path: exact check of kernel semantics vs plain JAX with a
    # multi-step grid and a partial (non-multiple-of-TB, non-multiple-of-8)
    # last block.
    big = jax.random.normal(k_big, (70, featureSize), jnp.float32)
    wd32, bd32, wlr32, blr32 = fuse_params(model.params, jnp.float32)
    l32, r32 = adj_decoder_pallas(big, wd32, bd32, wlr32, blr32,
                                  block_b=32, compute_dtype=jnp.float32)
    jax.block_until_ready((l32, r32))
    l32_ref, r32_ref = _reference(big, model.params)
    assert l32.shape == (70, featureSize) and r32.shape == (70, featureSize)
    assert jnp.allclose(l32, l32_ref, atol=1e-5, rtol=1e-5)
    assert jnp.allclose(r32, r32_ref, atol=1e-5, rtol=1e-5)

    print("KERNEL_OK")
</pallas_src>

<mosaic_0001>
module attributes {stable_mosaic.version = 11 : i64} {
  func.func @_adj_decoder_kernel(%arg0: i32, %arg1: memref<8x32xf32, #tpu.memory_space<vmem>>, %arg2: memref<32x32xbf16, #tpu.memory_space<vmem>>, %arg3: memref<1x32xf32, #tpu.memory_space<vmem>>, %arg4: memref<32x64xbf16, #tpu.memory_space<vmem>>, %arg5: memref<1x64xf32, #tpu.memory_space<vmem>>, %arg6: memref<8x32xbf16, #tpu.memory_space<vmem>>, %arg7: memref<8x32xbf16, #tpu.memory_space<vmem>>) attributes {dimension_semantics = [#tpu.dimension_semantics<parallel>], iteration_bounds = array<i64: 1>, scalar_prefetch = 0 : i64, scratch_operands = 0 : i64, tpu.core_type = #tpu.core_type<tc>, window_params = [{transform_indices = @transform_0, window_bounds = array<i64: 8, 32>}, {pipeline_mode = #tpu.pipeline_mode<synchronous>, transform_indices = @transform_1, window_bounds = array<i64: 32, 32>}, {pipeline_mode = #tpu.pipeline_mode<synchronous>, transform_indices = @transform_2, window_bounds = array<i64: 1, 32>}, {pipeline_mode = #tpu.pipeline_mode<synchronous>, transform_indices = @transform_3, window_bounds = array<i64: 32, 64>}, {pipeline_mode = #tpu.pipeline_mode<synchronous>, transform_indices = @transform_4, window_bounds = array<i64: 1, 64>}, {transform_indices = @transform_5, window_bounds = array<i64: 8, 32>}, {transform_indices = @transform_6, window_bounds = array<i64: 8, 32>}]} {
    %c0 = arith.constant 0 : index
    %c0_0 = arith.constant 0 : index
    %0 = vector.load %arg1[%c0, %c0_0] : memref<8x32xf32, #tpu.memory_space<vmem>>, vector<8x32xf32>
    %1 = arith.truncf %0 : vector<8x32xf32> to vector<8x32xbf16>
    %c0_1 = arith.constant 0 : index
    %c0_2 = arith.constant 0 : index
    %2 = vector.load %arg2[%c0_1, %c0_2] : memref<32x32xbf16, #tpu.memory_space<vmem>>, vector<32x32xbf16>
    %cst = arith.constant dense<0.000000e+00> : vector<8x32xf32>
    %3 = tpu.matmul %1, %2, %cst {dimension_numbers = #tpu.dot_dimension_numbers<[1], [0], [0], [1], [0, 0, 1, 1], [], []>} : vector<8x32xbf16>, vector<32x32xbf16>, vector<8x32xf32> -> vector<8x32xf32>
    %c0_3 = arith.constant 0 : index
    %c0_4 = arith.constant 0 : index
    %4 = vector.load %arg3[%c0_3, %c0_4] : memref<1x32xf32, #tpu.memory_space<vmem>>, vector<1x32xf32>
    %5 = vector.broadcast %4 : vector<1x32xf32> to vector<8x32xf32>
    %6 = arith.addf %3, %5 : vector<8x32xf32>
    %7 = math.tanh %6 : vector<8x32xf32>
    %8 = arith.truncf %7 : vector<8x32xf32> to vector<8x32xbf16>
    %c0_5 = arith.constant 0 : index
    %c0_6 = arith.constant 0 : index
    %9 = vector.load %arg4[%c0_5, %c0_6] : memref<32x64xbf16, #tpu.memory_space<vmem>>, vector<32x64xbf16>
    %cst_7 = arith.constant dense<0.000000e+00> : vector<8x64xf32>
    %10 = tpu.matmul %8, %9, %cst_7 {dimension_numbers = #tpu.dot_dimension_numbers<[1], [0], [0], [1], [0, 0, 1, 1], [], []>} : vector<8x32xbf16>, vector<32x64xbf16>, vector<8x64xf32> -> vector<8x64xf32>
    %c0_8 = arith.constant 0 : index
    %c0_9 = arith.constant 0 : index
    %11 = vector.load %arg5[%c0_8, %c0_9] : memref<1x64xf32, #tpu.memory_space<vmem>>, vector<1x64xf32>
    %12 = vector.broadcast %11 : vector<1x64xf32> to vector<8x64xf32>
    %13 = arith.addf %10, %12 : vector<8x64xf32>
    %14 = math.tanh %13 : vector<8x64xf32>
    %15 = vector.extract_strided_slice %14 {offsets = [0, 0], sizes = [8, 32], strides = [1, 1]} : vector<8x64xf32> to vector<8x32xf32>
    %16 = arith.truncf %15 : vector<8x32xf32> to vector<8x32xbf16>
    %c0_10 = arith.constant 0 : index
    %c0_11 = arith.constant 0 : index
    %17 = vector.load %arg6[%c0_10, %c0_11] : memref<8x32xbf16, #tpu.memory_space<vmem>>, vector<8x32xbf16>
    tpu.vector_store %arg6[%c0_10, %c0_11], %16 {strides = array<i32>} : memref<8x32xbf16, #tpu.memory_space<vmem>>, vector<8x32xbf16>,
    %18 = vector.extract_strided_slice %14 {offsets = [0, 32], sizes = [8, 32], strides = [1, 1]} : vector<8x64xf32> to vector<8x32xf32>
    %19 = arith.truncf %18 : vector<8x32xf32> to vector<8x32xbf16>
    %c0_12 = arith.constant 0 : index
    %c0_13 = arith.constant 0 : index
    %20 = vector.load %arg7[%c0_12, %c0_13] : memref<8x32xbf16, #tpu.memory_space<vmem>>, vector<8x32xbf16>
    tpu.vector_store %arg7[%c0_12, %c0_13], %19 {strides = array<i32>} : memref<8x32xbf16, #tpu.memory_space<vmem>>, vector<8x32xbf16>,
    return
  }
  func.func @transform_0(%arg0: i32) -> (i32, i32) {
    %c0_i32 = arith.constant 0 : i32
    %c0_i32_0 = arith.constant 0 : i32
    return %arg0, %c0_i32 : i32, i32
  }
  func.func @transform_1(%arg0: i32) -> (i32, i32) {
    %c0_i32 = arith.constant 0 : i32
    %c0_i32_0 = arith.constant 0 : i32
    %c0_i32_1 = arith.constant 0 : i32
    return %c0_i32, %c0_i32_0 : i32, i32
  }
  func.func @transform_2(%arg0: i32) -> (i32, i32) {
    %c0_i32 = arith.constant 0 : i32
    %c0_i32_0 = arith.constant 0 : i32
    %c0_i32_1 = arith.constant 0 : i32
    return %c0_i32, %c0_i32_0 : i32, i32
  }
  func.func @transform_3(%arg0: i32) -> (i32, i32) {
    %c0_i32 = arith.constant 0 : i32
    %c0_i32_0 = arith.constant 0 : i32
    %c0_i32_1 = arith.constant 0 : i32
    return %c0_i32, %c0_i32_0 : i32, i32
  }
  func.func @transform_4(%arg0: i32) -> (i32, i32) {
    %c0_i32 = arith.constant 0 : i32
    %c0_i32_0 = arith.constant 0 : i32
    %c0_i32_1 = arith.constant 0 : i32
    return %c0_i32, %c0_i32_0 : i32, i32
  }
  func.func @transform_5(%arg0: i32) -> (i32, i32) {
    %c0_i32 = arith.constant 0 : i32
    %c0_i32_0 = arith.constant 0 : i32
    return %arg0, %c0_i32 : i32, i32
  }
  func.func @transform_6(%arg0: i32) -> (i32, i32) {
    %c0_i32 = arith.constant 0 : i32
    %c0_i32_0 = arith.constant 0 : i32
    return %arg0, %c0_i32 : i32, i32
  }
}

</mosaic_0001>

<llo_original>
// kernel: adj_decoder_pallas.1
$region0: #{adj_decoder_pallas.1}
  #allocation0 [shape = 'u32[]', space=smem, size = 0x4, offset = 0x4, fixed_abs, tag = 'smem constant byte address 0x4 - core index']
  #allocation1 [shape = 'u32[144,128]{1,0:T(1,128)}', space=vmem, size = 0x12000, scoped, tag = 'internal scratch']
  %s0 = inlined_call_operand.hbm [shape: f32[2,32], index: 0, kind: input, shape index: {}]
  %s1 = inlined_call_operand.hbm [shape: bf16[32,32], index: 1, kind: input, shape index: {}]
  %s2 = inlined_call_operand.vmem [shape: f32[1,32], index: 2, kind: input, shape index: {}]
  %s3 = inlined_call_operand.hbm [shape: bf16[32,64], index: 3, kind: input, shape index: {}]
  %s4 = inlined_call_operand.vmem [shape: f32[1,64], index: 4, kind: input, shape index: {}]
  %s5 = inlined_call_operand.hbm [shape: bf16[2,32], index: 5, kind: output, shape index: {0}]
  %s6 = inlined_call_operand.hbm [shape: bf16[2,32], index: 6, kind: output, shape index: {1}]
  %7 = xla_tuple %s5, %s6
  %s8 = sld [smem:[#allocation0]]
  $region50: #{adj_decoder_pallas.1} parent=0
    _
  %s10 = ssub.s32 1, %s8
  %s11 = scalar_select 0, %s10, %s8
  $region1: #{adj_decoder_pallas.1} parent=0
    #allocation2 [shape = 'u8[4096]{0}', space=vmem, size = 0x1000, scoped, tag = 'input window, operand 0, single buffered']
    #allocation3 [shape = 's32[1]{0}', space=sflag, size = 0x4, scoped, tag = 'scoped memory for adj_decoder_pallas.1']
    #allocation4 [shape = 's32[1]{0}', space=sflag, size = 0x4, scoped, tag = 'scoped memory for adj_decoder_pallas.1']
    #allocation5 [shape = 'u8[8192]{0}', space=vmem, size = 0x2000, scoped, tag = 'input window, operand 1, single buffered']
    #allocation6 [shape = 's32[1]{0}', space=sflag, size = 0x4, scoped, tag = 'scoped memory for adj_decoder_pallas.1']
    #allocation7 [shape = 'u8[8192]{0}', space=vmem, size = 0x2000, scoped, tag = 'input window, operand 3, single buffered']
    #allocation8 [shape = 'u8[2048]{0}', space=vmem, size = 0x800, scoped, tag = 'output window, operand 0, single buffered']
    #allocation9 [shape = 'u8[2048]{0}', space=vmem, size = 0x800, scoped, tag = 'output window, operand 1, single buffered']
    #allocation10 [shape = 's32[1]{0}', space=sflag, size = 0x4, scoped, tag = 'scoped memory for adj_decoder_pallas.1']
    %12 = vsyncpa [#allocation3], 0
    %13 = vsyncpa [#allocation6], 0
    %14 = vsyncpa [#allocation4], 0
    %15 = vsyncpa [#allocation10], 0
    // Predicated region
    $region2: #{adj_decoder_pallas.1} parent=1 // pred_check
      _
    $region3: #{adj_decoder_pallas.1} parent=1 // pred_check_branch
      %17 = sbr.rel (0) target = $region5
    $region4: #{adj_decoder_pallas.1} parent=1 // pred_region
      %s19 = ssub.s32 128, 32
      %20 = vsyncadd [#allocation3], %s19
      %s21 = sshll.u32 [#allocation2], 4
      %s22 = int_to_ptr.vmem [resolvable:$true] %s21
      %27 = dma.hbm_to_vmem [thread:$0]  %s0, 32, %s22, [#allocation3], 32, 32, 2
    $region5: #{adj_decoder_pallas.1} parent=1 // pred_fallthru
      _
    // Predicated region
    $region6: #{adj_decoder_pallas.1} parent=1 // pred_check
      _
    $region7: #{adj_decoder_pallas.1} parent=1 // pred_check_branch
      %29 = sbr.rel (0) target = $region9
    $region8: #{adj_decoder_pallas.1} parent=1 // pred_region
      %s31 = ssub.s32 256, 256
      %32 = vsyncadd [#allocation6], %s31
      %s33 = sshll.u32 [#allocation5], 4
      %s34 = int_to_ptr.vmem [resolvable:$true] %s33
      %39 = dma.hbm_to_vmem [thread:$0]  %s1, 256, %s34, [#allocation6], 64, 64, 4
    $region9: #{adj_decoder_pallas.1} parent=1 // pred_fallthru
      _
    // Predicated region
    $region10: #{adj_decoder_pallas.1} parent=1 // pred_check
      _
    $region11: #{adj_decoder_pallas.1} parent=1 // pred_check_branch
      %41 = sbr.rel (0) target = $region13
    $region12: #{adj_decoder_pallas.1} parent=1 // pred_region
      _
    $region13: #{adj_decoder_pallas.1} parent=1 // pred_fallthru
      _
    // Predicated region
    $region14: #{adj_decoder_pallas.1} parent=1 // pred_check
      _
    $region15: #{adj_decoder_pallas.1} parent=1 // pred_check_branch
      %43 = sbr.rel (0) target = $region17
    $region16: #{adj_decoder_pallas.1} parent=1 // pred_region
      %s45 = ssub.s32 256, 256
      %46 = vsyncadd [#allocation6], %s45
      %s47 = sshll.u32 [#allocation7], 4
      %s48 = int_to_ptr.vmem [resolvable:$true] %s47
      %53 = dma.hbm_to_vmem [thread:$0]  %s3, 256, %s48, [#allocation6], 64, 64, 4
    $region17: #{adj_decoder_pallas.1} parent=1 // pred_fallthru
      _
    // Predicated region
    $region18: #{adj_decoder_pallas.1} parent=1 // pred_check
      _
    $region19: #{adj_decoder_pallas.1} parent=1 // pred_check_branch
      %55 = sbr.rel (0) target = $region21
    $region20: #{adj_decoder_pallas.1} parent=1 // pred_region
      _
    $region21: #{adj_decoder_pallas.1} parent=1 // pred_fallthru
      _
    // Predicated region
    $region22: #{adj_decoder_pallas.1} parent=1 // pred_check
      _
    $region23: #{adj_decoder_pallas.1} parent=1 // pred_check_branch
      %57 = sbr.rel (0) target = $region25
    $region24: #{adj_decoder_pallas.1} parent=1 // pred_region
      %58 = dma.done [#allocation3], 128
    $region25: #{adj_decoder_pallas.1} parent=1 // pred_fallthru
      _
    // Predicated region
    $region26: #{adj_decoder_pallas.1} parent=1 // pred_check
      _
    $region27: #{adj_decoder_pallas.1} parent=1 // pred_check_branch
      %60 = sbr.rel (0) target = $region29
    $region28: #{adj_decoder_pallas.1} parent=1 // pred_region
      %61 = dma.done [#allocation6], 256
    $region29: #{adj_decoder_pallas.1} parent=1 // pred_fallthru
      _
    // Predicated region
    $region30: #{adj_decoder_pallas.1} parent=1 // pred_check
      _
    $region31: #{adj_decoder_pallas.1} parent=1 // pred_check_branch
      %63 = sbr.rel (0) target = $region33
    $region32: #{adj_decoder_pallas.1} parent=1 // pred_region
      %64 = dma.done [#allocation6], 256
    $region33: #{adj_decoder_pallas.1} parent=1 // pred_fallthru
      _
    %v66 = vld [vmem:[#allocation2] sm:$0xff]
    %v67 = vpack.c.bf16 %v66, %v66
    %v68 = vld [vmem:[#allocation5] sm:$0xf]
    %v69 = vld [vmem:[#allocation5 + $0x4] sm:$0xf]
    %v70 = vld [vmem:[#allocation5 + $0x8] sm:$0xf]
    %v71 = vld [vmem:[#allocation5 + $0xc] sm:$0xf]
    %v72 = vld [vmem:[%s2] sm:$0x1]
    %v74 = vlaneseq
    %v75 = vshrl.u32 %v74, 7
    %v76 = vsub.s32 0, %v75
    %v77 = vrot.slane %v72, %v76
    %v83 = vunpack.c.l.b16 %v68
    %v84 = vunpack.c.l.b16 %v69
    %v85 = vunpack.c.l.b16 %v70
    %v86 = vunpack.c.l.b16 %v71
    %v87 = vpack.c.b16 %v84, %v83
    %v88 = vpack.c.b16 %v86, %v85
    %vm91 = vcmask 261120
    %v93 = vsel %vm91, %v67, 0
    %95 = vmatprep.subr.bf16.mxu0 0
    %96 = vmatpush1.bf16.msra.mxu0 %v87
    %97 = vmatprep.subr.bf16.mxu0 0
    %98 = vmatpush1.bf16.msra.mxu0 %v88
    %99 = vmatprep.subr.bf16.mxu0 0
    %100 = vmatpush1.bf16.msra.mxu0 0
    %101 = vmatprep.subr.bf16.mxu0 0
    %102 = vmatpush1.bf16.msra.mxu0 0
    %103 = vmatprep.subr.bf16.mxu0 0
    %104 = vmatpush1.bf16.msra.mxu0 0
    %105 = vmatprep.subr.bf16.mxu0 0
    %106 = vmatpush1.bf16.msra.mxu0 0
    %107 = vmatprep.subr.bf16.mxu0 0
    %108 = vmatpush1.bf16.msra.mxu0 0
    %109 = vmatprep.subr.bf16.mxu0 0
    %110 = vmatpush1.bf16.msra.mxu0 0
    %111 = vmatprep.subr.bf16.mxu0 0
    %112 = vmatpush1.bf16.msra.mxu0 0
    %113 = vmatprep.subr.bf16.mxu0 0
    %114 = vmatpush1.bf16.msra.mxu0 0
    %115 = vmatprep.subr.bf16.mxu0 0
    %116 = vmatpush1.bf16.msra.mxu0 0
    %117 = vmatprep.subr.bf16.mxu0 0
    %118 = vmatpush1.bf16.msra.mxu0 0
    %119 = vmatprep.subr.bf16.mxu0 0
    %120 = vmatpush1.bf16.msra.mxu0 0
    %121 = vmatprep.subr.bf16.mxu0 0
    %122 = vmatpush1.bf16.msra.mxu0 0
    %123 = vmatprep.subr.bf16.mxu0 0
    %124 = vmatpush1.bf16.msra.mxu0 0
    %125 = vmatprep.subr.bf16.mxu0 0
    %126 = vmatpush1.bf16.msra.mxu0 0
    %127 = vmatprep.mubr.bf16.mxu0 0
    %128 = vmatmul.mubr.bf16.gmra.mrb[0].mxu0 %v93
    %v129 = vpop.f32.mrb[0].mxu0
    %v130 = vadd.f32 %v77, %v129
    %v131 = vpop.f32.mrb[0].mxu0
    %v132 = vpop.f32.mrb[0].mxu0
    %v133 = vpop.f32.mrb[0].mxu0
    %134 = vdwg.mxu0
    %v135 = vtanh.pop %v130
    %v136 = vpack.c.bf16 %v135, %v135
    %v137 = vld [vmem:[#allocation7] sm:$0xf]
    %v138 = vld [vmem:[#allocation7 + $0x4] sm:$0xf]
    %v139 = vld [vmem:[#allocation7 + $0x8] sm:$0xf]
    %v140 = vld [vmem:[#allocation7 + $0xc] sm:$0xf]
    %v141 = vld [vmem:[%s4] sm:$0x1]
    %v143 = vlaneseq
    %v144 = vshrl.u32 %v143, 7
    %v145 = vsub.s32 0, %v144
    %v146 = vrot.slane %v141, %v145
    %v152 = vunpack.c.l.b16 %v137
    %v153 = vunpack.c.l.b16 %v138
    %v154 = vunpack.c.l.b16 %v139
    %v155 = vunpack.c.l.b16 %v140
    %v156 = vpack.c.b16 %v153, %v152
    %v157 = vpack.c.b16 %v155, %v154
    %v161 = vsel %vm91, %v136, 0
    %163 = vmatprep.subr.bf16.mxu0 0
    %164 = vmatpush1.bf16.msra.mxu0 %v156
    %165 = vmatprep.subr.bf16.mxu0 0
    %166 = vmatpush1.bf16.msra.mxu0 %v157
    %167 = vmatprep.subr.bf16.mxu0 0
    %168 = vmatpush1.bf16.msra.mxu0 0
    %169 = vmatprep.subr.bf16.mxu0 0
    %170 = vmatpush1.bf16.msra.mxu0 0
    %171 = vmatprep.subr.bf16.mxu0 0
    %172 = vmatpush1.bf16.msra.mxu0 0
    %173 = vmatprep.subr.bf16.mxu0 0
    %174 = vmatpush1.bf16.msra.mxu0 0
    %175 = vmatprep.subr.bf16.mxu0 0
    %176 = vmatpush1.bf16.msra.mxu0 0
    %177 = vmatprep.subr.bf16.mxu0 0
    %178 = vmatpush1.bf16.msra.mxu0 0
    %179 = vmatprep.subr.bf16.mxu0 0
    %180 = vmatpush1.bf16.msra.mxu0 0
    %181 = vmatprep.subr.bf16.mxu0 0
    %182 = vmatpush1.bf16.msra.mxu0 0
    %183 = vmatprep.subr.bf16.mxu0 0
    %184 = vmatpush1.bf16.msra.mxu0 0
    %185 = vmatprep.subr.bf16.mxu0 0
    %186 = vmatpush1.bf16.msra.mxu0 0
    %187 = vmatprep.subr.bf16.mxu0 0
    %188 = vmatpush1.bf16.msra.mxu0 0
    %189 = vmatprep.subr.bf16.mxu0 0
    %190 = vmatpush1.bf16.msra.mxu0 0
    %191 = vmatprep.subr.bf16.mxu0 0
    %192 = vmatpush1.bf16.msra.mxu0 0
    %193 = vmatprep.subr.bf16.mxu0 0
    %194 = vmatpush1.bf16.msra.mxu0 0
    %195 = vmatprep.mubr.bf16.mxu0 0
    %196 = vmatmul.mubr.bf16.gmra.mrb[0].mxu0 %v161
    %v197 = vpop.f32.mrb[0].mxu0
    %v198 = vadd.f32 %v146, %v197
    %v199 = vpop.f32.mrb[0].mxu0
    %v200 = vpop.f32.mrb[0].mxu0
    %v201 = vpop.f32.mrb[0].mxu0
    %202 = vdwg.mxu0
    %v203 = vtanh.pop %v198
    %v204 = vpack.c.bf16 %v203, %v203
    %v207 = vunpack.c.l.s4 1966171168
    %v208 = vunpack.c.0.s8 %v207
    %v209 = vlaneseq
    %v210 = vshrl.u32 %v209, 7
    %v211 = vsub.s32 %v208, %v210
    %v212 = vrot.slane %v204, %v211
    %v213 = vcombine.high %v212, %v212
    %v215 = vunpack.c.l.s4 1966171168
    %v216 = vunpack.c.0.s8 %v215
    %v217 = vlaneseq
    %v218 = vshrl.u32 %v217, 7
    %v219 = vsub.s32 %v216, %v218
    %v220 = vrot.slane %v212, %v219
    %v222 = vunpack.c.l.s4 1966171168
    %v223 = vunpack.c.0.s8 %v222
    %v224 = vlaneseq
    %v225 = vshrl.u32 %v224, 7
    %v226 = vsub.s32 %v223, %v225
    %v227 = vrot.slane %v213, %v226
    %v228 = vcombine.high %v220, %v220
    %v229 = vcombine.high %v227, %v227
    %vm234 = vcmask 253952
    %235 = vst.msk [vmem:[#allocation8] sm:$0x1] %vm234, %v220
    %236 = vst.msk [vmem:[#allocation8 + $0x1] sm:$0x1] %vm234, %v227
    %237 = vst.msk [vmem:[#allocation8 + $0x2] sm:$0x1] %vm234, %v228
    %238 = vst.msk [vmem:[#allocation8 + $0x3] sm:$0x1] %vm234, %v229
    %239 = vrot.lane.b32.xlu0 %v220, 96
    %v240 = vpop.permute.xlu0 %239
    %241 = vrot.lane.b32.xlu0 %v227, 96
    %v242 = vpop.permute.xlu0 %241
    %243 = vrot.lane.b32.xlu0 %v228, 96
    %v244 = vpop.permute.xlu0 %243
    %245 = vrot.lane.b32.xlu0 %v229, 96
    %v246 = vpop.permute.xlu0 %245
    %251 = vst.msk [vmem:[#allocation9] sm:$0x1] %vm234, %v240
    %252 = vst.msk [vmem:[#allocation9 + $0x1] sm:$0x1] %vm234, %v242
    %253 = vst.msk [vmem:[#allocation9 + $0x2] sm:$0x1] %vm234, %v244
    %254 = vst.msk [vmem:[#allocation9 + $0x3] sm:$0x1] %vm234, %v246
    // Predicated region
    $region34: #{adj_decoder_pallas.1} parent=1 // pred_check
      _
    $region35: #{adj_decoder_pallas.1} parent=1 // pred_check_branch
      %256 = sbr.rel (0) target = $region37
    $region36: #{adj_decoder_pallas.1} parent=1 // pred_region
      %s258 = ssub.s32 64, 16
      %259 = vsyncadd [#allocation4], %s258
      %s260 = sshll.u32 [#allocation8], 4
      %s261 = int_to_ptr.vmem [resolvable:$true] %s260
      %266 = dma.vmem_to_hbm [thread:$0]  %s261, 16, %s5, [#allocation4], 16, 16, 1
    $region37: #{adj_decoder_pallas.1} parent=1 // pred_fallthru
      _
    // Predicated region
    $region38: #{adj_decoder_pallas.1} parent=1 // pred_check
      _
    $region39: #{adj_decoder_pallas.1} parent=1 // pred_check_branch
      %268 = sbr.rel (0) target = $region41
    $region40: #{adj_decoder_pallas.1} parent=1 // pred_region
      %s270 = ssub.s32 64, 16
      %271 = vsyncadd [#allocation10], %s270
      %s272 = sshll.u32 [#allocation9], 4
      %s273 = int_to_ptr.vmem [resolvable:$true] %s272
      %278 = dma.vmem_to_hbm [thread:$0]  %s273, 16, %s6, [#allocation10], 16, 16, 1
    $region41: #{adj_decoder_pallas.1} parent=1 // pred_fallthru
      _
    // Predicated region
    $region42: #{adj_decoder_pallas.1} parent=1 // pred_check
      _
    $region43: #{adj_decoder_pallas.1} parent=1 // pred_check_branch
      %280 = sbr.rel (0) target = $region45
    $region44: #{adj_decoder_pallas.1} parent=1 // pred_region
      %281 = dma.done [#allocation4], 64
    $region45: #{adj_decoder_pallas.1} parent=1 // pred_fallthru
      _
    // Predicated region
    $region46: #{adj_decoder_pallas.1} parent=1 // pred_check
      _
    $region47: #{adj_decoder_pallas.1} parent=1 // pred_check_branch
      %283 = sbr.rel (0) target = $region49
    $region48: #{adj_decoder_pallas.1} parent=1 // pred_region
      %284 = dma.done [#allocation10], 64
    $region49: #{adj_decoder_pallas.1} parent=1 // pred_fallthru
      _
    %285 = vsyncpa [#allocation3], 1
    %286 = vsyncpa [#allocation6], 1
    %287 = vsyncpa [#allocation4], 1
    %288 = vsyncpa [#allocation10], 1

</llo_original>
